<compile_context>
chip_gen: v5e
topology: v5e:2x2
jax: 0.10.0
libtpu: 0.0.40
codegen_flags: <defaults>
</compile_context>

<pallas_src>
import math

import jax
import jax.numpy as jnp
from jax.experimental import pallas as pl
from jax.experimental.pallas import tpu as pltpu


def _round_up(x, m):
    return (x + m - 1) // m * m


def _tile_bytes(shape, dtype):
    """VMEM footprint of an array rounded to the native (sublane, lane) tiling."""
    itemsize = jnp.dtype(dtype).itemsize
    sub_mult = 8 * max(1, 4 // itemsize)          # 8 (f32/i32), 16 (bf16), 32 (i8)
    dims = list(shape)
    if len(dims) == 1:
        dims = [1] + dims
    lead = 1
    for d in dims[:-2]:
        lead *= d
    return lead * _round_up(dims[-2], sub_mult) * _round_up(dims[-1], 128) * itemsize


def _pad_cols(x, n):
    return jnp.pad(x, ((0, 0), (0, n - x.shape[1])))


def _pad_rows(x, n):
    return jnp.pad(x, ((0, n - x.shape[0]), (0, 0)))


def _make_din_kernel(TB, T, T_pad, E, n_items, gather_in_kernel):
    R = TB * T_pad
    scale = 1.0 / math.sqrt(E)

    def kernel(x_ref, mat_ref, item_ref, uic_ref,
               wq_ref, bq_ref, bkv_ref,
               w1u_ref, w1i_ref, b1_ref, w2_ref, b2_ref,
               out_ref):
        # ---- history K|V rows (lane-dense: lanes [0,EP) = K, [EP,2EP) = V) ----
        if gather_in_kernel:
            # Fused embedding gather as a one-hot matmul on the idle MXU; the
            # projected item table (item_embd @ [Wk|Wv]) is VMEM-resident.
            ids = x_ref[...]                                             # (R, 1) i32
            iota = jax.lax.broadcasted_iota(jnp.int32, (R, n_items), 1)
            onehot = (ids == iota).astype(mat_ref.dtype)                 # (R, I)
            kv = jnp.dot(onehot, mat_ref[...],
                         preferred_element_type=jnp.float32)             # (R, 2EP)
        else:
            # Large-table fallback: history embeddings gathered in the wrapper.
            kv = jnp.dot(x_ref[...], mat_ref[...],
                         preferred_element_type=jnp.float32)             # (R, 2EP)
        kv = kv + bkv_ref[...].astype(jnp.float32)
        EP = kv.shape[-1] // 2
        kv = kv.reshape(TB, T_pad, 2 * EP)
        k = kv[:, :, :EP]                         # 128-lane-tile aligned split
        v = kv[:, :, EP:]

        # ---- query projection (zero-padded to EP lanes) ----
        q = (jnp.dot(item_ref[...], wq_ref[...],
                     preferred_element_type=jnp.float32)
             + bq_ref[...].astype(jnp.float32))                          # (TB, EP)

        # ---- softmax attention over the (padded) history axis ----
        scores = jnp.sum(q[:, None, :] * k, axis=-1) * scale             # (TB, T_pad)
        if T_pad != T:
            t_idx = jax.lax.broadcasted_iota(jnp.int32, (TB, T_pad), 1)
            scores = jnp.where(t_idx < T, scores, jnp.float32(-1e30))
        m = jnp.max(scores, axis=-1, keepdims=True)
        p = jnp.exp(scores - m)
        denom = jnp.sum(p, axis=-1, keepdims=True)
        probs = p * pl.reciprocal(denom, approx=True)                    # EUP recip
        interest = jnp.sum(probs[:, :, None] * v, axis=1)                # (TB, EP)

        # ---- fc layers: K-split matmuls (no lane concat / sub-tile slices) ----
        h = (jnp.dot(uic_ref[...], w1u_ref[...],
                     preferred_element_type=jnp.float32)
             + jnp.dot(interest.astype(w1i_ref.dtype), w1i_ref[...],
                       preferred_element_type=jnp.float32)
             + b1_ref[...].astype(jnp.float32))
        h = jnp.maximum(h, 0.0)                                          # (TB, HP)

        # Final N=1 layer as a transposed matmul so the logits land lane-dense
        # across the batch tile: (8, HP) x (TB, HP)^T -> (8, TB), rows equal.
        logit = jax.lax.dot_general(
            w2_ref[...].astype(jnp.float32), h,
            dimension_numbers=(((1,), (1,)), ((), ())),
            preferred_element_type=jnp.float32)                          # (8, TB)
        logit = logit + b2_ref[...].astype(jnp.float32)
        out_ref[...] = jax.nn.sigmoid(logit)

    return kernel


def din_forward(user_id, item_id, hist_item_ids, context_feature, params,
                *, batch_tile=256, gather_in_kernel=None):
    """Pallas TPU forward pass of DeepInterestNetwork."""
    tbl = params["item_embd"]
    dt = tbl.dtype
    n_items, E = tbl.shape
    B, T = hist_item_ids.shape
    C = context_feature.shape[1]
    H1 = params["w1"].shape[1]

    EP = _round_up(E, 128)           # lane-dense width of q / k / v
    HP = _round_up(H1, 128)          # lane-dense width of the hidden fc layer
    T_pad = _round_up(T, 8)          # sublane-aligned history length

    # ---- small per-row gathers + lane-dense weight packing in the wrapper ----
    user_e = jnp.take(params["user_embd"], user_id, axis=0)          # (B, E)
    item_e = jnp.take(tbl, item_id, axis=0)                          # (B, E)
    ctx = context_feature.astype(dt)
    uic = jnp.concatenate([user_e, item_e, ctx], axis=1)             # (B, 2E+C)

    wq = _pad_cols(params["wq"], EP)                                 # (E, EP)
    bq = _pad_cols(params["bq"], EP)                                 # (1, EP)
    wkv = jnp.concatenate([_pad_cols(params["wk"], EP),
                           _pad_cols(params["wv"], EP)], axis=1)     # (E, 2EP)
    bkv = jnp.concatenate([_pad_cols(params["bk"], EP),
                           _pad_cols(params["bv"], EP)],
                          axis=1).astype(jnp.float32)                # (1, 2EP)
    w1 = params["w1"]
    # combined = [user | interest | item | ctx]; split W1 rows so the kernel
    # never lane-concatenates: a uic part and an interest part.
    w1_uic = _pad_cols(jnp.concatenate([w1[:E], w1[2 * E:]], axis=0), HP)   # (2E+C, HP)
    w1_int = _pad_rows(_pad_cols(w1[E:2 * E], HP), EP)                      # (EP, HP)
    b1 = _pad_cols(params["b1"], HP)                                        # (1, HP)
    w2 = jnp.broadcast_to(_pad_cols(params["w2"].reshape(1, -1), HP), (8, HP))
    b2 = params["b2"].reshape(1, 1)

    # ---- batch tile: multiple of 8; >=2 grid steps when B allows (v7x megacore) ----
    if B <= 8:
        TB = _round_up(max(B, 1), 8)
    else:
        TB = min(_round_up(batch_tile, 8), _round_up(pl.cdiv(B, 2), 8))

    if gather_in_kernel is None:
        # In-kernel one-hot gather only when the projected table and per-step
        # one-hot matrix comfortably fit in VMEM.
        gather_in_kernel = (
            _tile_bytes((n_items, 2 * EP), jnp.float32) <= (2 << 20)
            and TB * T_pad * _round_up(n_items, 128) * 4 <= (6 << 20))

    # ---- per-generation VMEM budget & layout-aware footprint estimate ----
    try:
        vmem_cap = int(pltpu.get_tpu_info().vmem_capacity_bytes)
    except Exception:
        vmem_cap = 64 * 1024 * 1024
    budget = int(min(vmem_cap * 0.45, 48 * 1024 * 1024))

    def est_bytes(tb):
        r = tb * T_pad
        fixed = (_tile_bytes((E, EP), dt) + _tile_bytes((1, EP), dt)
                 + _tile_bytes((1, 2 * EP), jnp.float32)
                 + _tile_bytes((2 * E + C, HP), dt) + _tile_bytes((EP, HP), dt)
                 + _tile_bytes((1, HP), dt) + _tile_bytes((8, HP), dt)
                 + _tile_bytes((1, 1), dt))
        tmp = (_tile_bytes((r, 2 * EP), jnp.float32)                  # kv
               + 2 * _tile_bytes((tb, T_pad, EP), jnp.float32)        # q*k, probs*v
               + 3 * _tile_bytes((tb, EP), jnp.float32)               # q, interest, h
               + 2 * _tile_bytes((tb, T_pad), jnp.float32))           # scores, probs
        if gather_in_kernel:
            fixed += _tile_bytes((n_items, 2 * EP), jnp.float32)
            x_tile = _tile_bytes((r, 1), jnp.int32)
            tmp += r * _round_up(n_items, 128) * 4                    # one-hot
        else:
            fixed += _tile_bytes((E, 2 * EP), dt)
            x_tile = _tile_bytes((r, E), dt)
        tiles = (x_tile + _tile_bytes((tb, E), dt)
                 + _tile_bytes((tb, 2 * E + C), dt)
                 + _tile_bytes((8, tb), jnp.float32))
        return 2 * fixed + 2 * tiles + tmp        # x2: double-buffered pipeline

    while TB > 8 and est_bytes(TB) > budget:
        TB = _round_up(max(TB // 2, 8), 8)

    B_pad = _round_up(B, TB)
    G = B_pad // TB
    R = TB * T_pad

    pad_b = B_pad - B
    if pad_b:
        item_e = jnp.pad(item_e, ((0, pad_b), (0, 0)))
        uic = jnp.pad(uic, ((0, pad_b), (0, 0)))
    ids = jnp.pad(hist_item_ids.astype(jnp.int32),
                  ((0, pad_b), (0, T_pad - T)))                       # (B_pad, T_pad)

    if gather_in_kernel:
        x_in = ids.reshape(B_pad * T_pad, 1)                          # (R_total, 1)
        mat_in = jnp.dot(tbl.astype(jnp.float32),
                         wkv.astype(jnp.float32))                     # (I, 2EP) f32
    else:
        hist_e = jnp.take(tbl, ids, axis=0).reshape(B_pad * T_pad, E)
        x_in = hist_e
        mat_in = wkv

    tiled = lambda i: (i, 0)
    fixed = lambda i: (0, 0)

    grid_spec = pltpu.PrefetchScalarGridSpec(
        num_scalar_prefetch=0,
        grid=(G,),
        in_specs=[
            pl.BlockSpec((R, x_in.shape[1]), tiled),        # ids column / hist rows
            pl.BlockSpec(mat_in.shape, fixed),              # kv_tbl / wkv (resident)
            pl.BlockSpec((TB, E), tiled),                   # item embeddings (query)
            pl.BlockSpec((TB, 2 * E + C), tiled),           # [user | item | ctx]
            pl.BlockSpec((E, EP), fixed),                   # wq
            pl.BlockSpec((1, EP), fixed),                   # bq
            pl.BlockSpec((1, 2 * EP), fixed),               # bkv (f32)
            pl.BlockSpec((2 * E + C, HP), fixed),           # w1 (uic rows)
            pl.BlockSpec((EP, HP), fixed),                  # w1 (interest rows)
            pl.BlockSpec((1, HP), fixed),                   # b1
            pl.BlockSpec((8, HP), fixed),                   # w2 (row-replicated)
            pl.BlockSpec((1, 1), fixed),                    # b2
        ],
        out_specs=pl.BlockSpec((8, TB), tiled),
    )

    out = pl.pallas_call(
        _make_din_kernel(TB, T, T_pad, E, n_items, gather_in_kernel),
        out_shape=jax.ShapeDtypeStruct((8 * G, TB), jnp.float32),
        grid_spec=grid_spec,
        compiler_params=pltpu.CompilerParams(
            dimension_semantics=("parallel",),
            vmem_limit_bytes=budget,
        ),
    )(x_in, mat_in, item_e, uic,
      wq, bq, bkv, w1_uic, w1_int, b1, w2, b2)

    # rows 0, 8, 16, ... carry the logits (the 8 sublane rows are identical).
    return out.reshape(G, 8, TB)[:, 0, :].reshape(B_pad)[:B]


def init_params(key, user_size, item_size, embd_dim, context_dim, hidden=64):
    ks = jax.random.split(key, 10)

    def lin(k, fan_in, fan_out):
        kw, kb = jax.random.split(k)
        bound = 1.0 / math.sqrt(fan_in)
        w = jax.random.uniform(kw, (fan_in, fan_out), jnp.float32, -bound, bound)
        b = jax.random.uniform(kb, (1, fan_out), jnp.float32, -bound, bound)
        return w, b

    params = {}
    params["user_embd"] = jax.random.normal(ks[0], (user_size, embd_dim), jnp.float32)
    params["item_embd"] = jax.random.normal(ks[1], (item_size, embd_dim), jnp.float32)
    params["wq"], params["bq"] = lin(ks[2], embd_dim, embd_dim)
    params["wk"], params["bk"] = lin(ks[3], embd_dim, embd_dim)
    params["wv"], params["bv"] = lin(ks[4], embd_dim, embd_dim)
    fc_in = 3 * embd_dim + context_dim
    params["w1"], params["b1"] = lin(ks[5], fc_in, hidden)
    params["w2"], params["b2"] = lin(ks[6], hidden, 1)
    return params


def din_reference(user_id, item_id, hist_item_ids, context_feature, params):
    """Pure-JAX f32 reference (mirrors the PyTorch forward)."""
    p = jax.tree_util.tree_map(lambda x: x.astype(jnp.float32), params)
    ctx = context_feature.astype(jnp.float32)
    user_e = jnp.take(p["user_embd"], user_id, axis=0)
    item_e = jnp.take(p["item_embd"], item_id, axis=0)
    hist_e = jnp.take(p["item_embd"], hist_item_ids, axis=0)
    E = item_e.shape[-1]

    q = item_e @ p["wq"] + p["bq"]
    k = jnp.einsum("bte,eh->bth", hist_e, p["wk"]) + p["bk"]
    v = jnp.einsum("bte,eh->bth", hist_e, p["wv"]) + p["bv"]
    scores = jnp.einsum("be,bte->bt", q, k) / math.sqrt(E)
    probs = jax.nn.softmax(scores, axis=-1)
    interest = jnp.einsum("bt,bte->be", probs, v)

    combined = jnp.concatenate([user_e, interest, item_e, ctx], axis=1)
    h = jax.nn.relu(combined @ p["w1"] + p["b1"])
    logit = h @ p["w2"] + p["b2"]
    return jax.nn.sigmoid(logit[:, 0])


if __name__ == "__main__":
    USER_SIZE, ITEM_SIZE = 50, 100
    EMBD_DIM, CONTEXT_DIM = 32, 16
    B, T = 8, 8

    key = jax.random.PRNGKey(0)
    kp, ku, ki, kh, kc = jax.random.split(key, 5)

    params = init_params(kp, USER_SIZE, ITEM_SIZE, EMBD_DIM, CONTEXT_DIM)
    user_id = jax.random.randint(ku, (B,), 0, USER_SIZE)
    item_id = jax.random.randint(ki, (B,), 0, ITEM_SIZE)
    hist_item_ids = jax.random.randint(kh, (B, T), 0, ITEM_SIZE)
    context_feature = jax.random.normal(kc, (B, CONTEXT_DIM), jnp.float32)

    ref = din_reference(user_id, item_id, hist_item_ids, context_feature, params)

    # f32 parameters, in-kernel one-hot gather (approx reciprocal in softmax).
    out_f32 = jax.block_until_ready(
        din_forward(user_id, item_id, hist_item_ids, context_feature, params))
    assert out_f32.shape == (B,)
    assert jnp.allclose(out_f32, ref, atol=5e-3, rtol=5e-3), (out_f32, ref)

    # Large-table fallback path (wrapper-side history gather).
    out_fb = jax.block_until_ready(
        din_forward(user_id, item_id, hist_item_ids, context_feature, params,
                    gather_in_kernel=False))
    assert jnp.allclose(out_fb, ref, atol=5e-3, rtol=5e-3), (out_fb, ref)

    # bf16 parameters (halved HBM/VMEM traffic, f32 MXU accumulation).
    params_bf16 = jax.tree_util.tree_map(
        lambda x: x.astype(jnp.bfloat16), params)
    out_bf16 = jax.block_until_ready(
        din_forward(user_id, item_id, hist_item_ids, context_feature, params_bf16))
    assert out_bf16.shape == (B,)
    assert jnp.allclose(out_bf16, ref, atol=3e-2, rtol=3e-2), (out_bf16, ref)

    print("KERNEL_OK")
</pallas_src>

<mosaic_0001>
module attributes {stable_mosaic.version = 11 : i64} {
  func.func @kernel(%arg0: i32, %arg1: memref<64x1xi32, #tpu.memory_space<vmem>>, %arg2: memref<100x256xf32, #tpu.memory_space<vmem>>, %arg3: memref<8x32xf32, #tpu.memory_space<vmem>>, %arg4: memref<8x80xf32, #tpu.memory_space<vmem>>, %arg5: memref<32x128xf32, #tpu.memory_space<vmem>>, %arg6: memref<1x128xf32, #tpu.memory_space<vmem>>, %arg7: memref<1x256xf32, #tpu.memory_space<vmem>>, %arg8: memref<80x128xf32, #tpu.memory_space<vmem>>, %arg9: memref<128x128xf32, #tpu.memory_space<vmem>>, %arg10: memref<1x128xf32, #tpu.memory_space<vmem>>, %arg11: memref<8x128xf32, #tpu.memory_space<vmem>>, %arg12: memref<1x1xf32, #tpu.memory_space<vmem>>, %arg13: memref<8x8xf32, #tpu.memory_space<vmem>>) attributes {dimension_semantics = [#tpu.dimension_semantics<parallel>], iteration_bounds = array<i64: 1>, scalar_prefetch = 0 : i64, scratch_operands = 0 : i64, tpu.core_type = #tpu.core_type<tc>, window_params = [{transform_indices = @transform_0, window_bounds = array<i64: 64, 1>}, {pipeline_mode = #tpu.pipeline_mode<synchronous>, transform_indices = @transform_1, window_bounds = array<i64: 100, 256>}, {transform_indices = @transform_2, window_bounds = array<i64: 8, 32>}, {transform_indices = @transform_3, window_bounds = array<i64: 8, 80>}, {pipeline_mode = #tpu.pipeline_mode<synchronous>, transform_indices = @transform_4, window_bounds = array<i64: 32, 128>}, {pipeline_mode = #tpu.pipeline_mode<synchronous>, transform_indices = @transform_5, window_bounds = array<i64: 1, 128>}, {pipeline_mode = #tpu.pipeline_mode<synchronous>, transform_indices = @transform_6, window_bounds = array<i64: 1, 256>}, {pipeline_mode = #tpu.pipeline_mode<synchronous>, transform_indices = @transform_7, window_bounds = array<i64: 80, 128>}, {pipeline_mode = #tpu.pipeline_mode<synchronous>, transform_indices = @transform_8, window_bounds = array<i64: 128, 128>}, {pipeline_mode = #tpu.pipeline_mode<synchronous>, transform_indices = @transform_9, window_bounds = array<i64: 1, 128>}, {pipeline_mode = #tpu.pipeline_mode<synchronous>, transform_indices = @transform_10, window_bounds = array<i64: 8, 128>}, {pipeline_mode = #tpu.pipeline_mode<synchronous>, transform_indices = @transform_11, window_bounds = array<i64: 1, 1>}, {transform_indices = @transform_12, window_bounds = array<i64: 8, 8>}]} {
    %c0 = arith.constant 0 : index
    %c0_0 = arith.constant 0 : index
    %0 = vector.load %arg1[%c0, %c0_0] : memref<64x1xi32, #tpu.memory_space<vmem>>, vector<64x1xi32>
    %1 = tpu.iota {dimensions = array<i32: 1>} : vector<64x100xi32>
    %2 = vector.broadcast %0 : vector<64x1xi32> to vector<64x100xi32>
    %3 = arith.cmpi eq, %2, %1 : vector<64x100xi32>
    %4 = arith.extui %3 : vector<64x100xi1> to vector<64x100xi32>
    %5 = arith.sitofp %4 : vector<64x100xi32> to vector<64x100xf32>
    %c0_1 = arith.constant 0 : index
    %c0_2 = arith.constant 0 : index
    %6 = vector.load %arg2[%c0_1, %c0_2] : memref<100x256xf32, #tpu.memory_space<vmem>>, vector<100x256xf32>
    %cst = arith.constant dense<0.000000e+00> : vector<64x256xf32>
    %7 = tpu.matmul %5, %6, %cst {dimension_numbers = #tpu.dot_dimension_numbers<[1], [0], [0], [1], [0, 0, 1, 1], [], []>} : vector<64x100xf32>, vector<100x256xf32>, vector<64x256xf32> -> vector<64x256xf32>
    %c0_3 = arith.constant 0 : index
    %c0_4 = arith.constant 0 : index
    %8 = vector.load %arg7[%c0_3, %c0_4] : memref<1x256xf32, #tpu.memory_space<vmem>>, vector<1x256xf32>
    %9 = vector.broadcast %8 : vector<1x256xf32> to vector<64x256xf32>
    %10 = arith.addf %7, %9 : vector<64x256xf32>
    %11 = vector.shape_cast %10 : vector<64x256xf32> to vector<8x8x256xf32>
    %12 = vector.extract_strided_slice %11 {offsets = [0, 0, 0], sizes = [8, 8, 128], strides = [1, 1, 1]} : vector<8x8x256xf32> to vector<8x8x128xf32>
    %13 = vector.extract_strided_slice %11 {offsets = [0, 0, 128], sizes = [8, 8, 128], strides = [1, 1, 1]} : vector<8x8x256xf32> to vector<8x8x128xf32>
    %c0_5 = arith.constant 0 : index
    %c0_6 = arith.constant 0 : index
    %14 = vector.load %arg3[%c0_5, %c0_6] : memref<8x32xf32, #tpu.memory_space<vmem>>, vector<8x32xf32>
    %c0_7 = arith.constant 0 : index
    %c0_8 = arith.constant 0 : index
    %15 = vector.load %arg5[%c0_7, %c0_8] : memref<32x128xf32, #tpu.memory_space<vmem>>, vector<32x128xf32>
    %cst_9 = arith.constant dense<0.000000e+00> : vector<8x128xf32>
    %16 = tpu.matmul %14, %15, %cst_9 {dimension_numbers = #tpu.dot_dimension_numbers<[1], [0], [0], [1], [0, 0, 1, 1], [], []>} : vector<8x32xf32>, vector<32x128xf32>, vector<8x128xf32> -> vector<8x128xf32>
    %c0_10 = arith.constant 0 : index
    %c0_11 = arith.constant 0 : index
    %17 = vector.load %arg6[%c0_10, %c0_11] : memref<1x128xf32, #tpu.memory_space<vmem>>, vector<1x128xf32>
    %18 = vector.broadcast %17 : vector<1x128xf32> to vector<8x128xf32>
    %19 = arith.addf %16, %18 : vector<8x128xf32>
    %20 = vector.shape_cast %19 : vector<8x128xf32> to vector<8x1x128xf32>
    %21 = vector.broadcast %20 : vector<8x1x128xf32> to vector<8x8x128xf32>
    %22 = arith.mulf %21, %12 : vector<8x8x128xf32>
    %cst_12 = arith.constant dense<0.000000e+00> : vector<8x8xf32>
    %23 = vector.multi_reduction <add>, %22, %cst_12 [2] : vector<8x8x128xf32> to vector<8x8xf32>
    %cst_13 = arith.constant 0.176776692 : f32
    %24 = vector.broadcast %cst_13 : f32 to vector<8x8xf32>
    %25 = arith.mulf %23, %24 : vector<8x8xf32>
    %cst_14 = arith.constant dense<0xFF800000> : vector<8xf32>
    %26 = vector.multi_reduction <maximumf>, %25, %cst_14 [1] : vector<8x8xf32> to vector<8xf32>
    %27 = vector.shape_cast %26 : vector<8xf32> to vector<8x1xf32>
    %28 = vector.broadcast %27 : vector<8x1xf32> to vector<8x8xf32>
    %29 = arith.subf %25, %28 : vector<8x8xf32>
    %30 = math.exp %29 : vector<8x8xf32>
    %cst_15 = arith.constant dense<0.000000e+00> : vector<8xf32>
    %31 = vector.multi_reduction <add>, %30, %cst_15 [1] : vector<8x8xf32> to vector<8xf32>
    %32 = vector.shape_cast %31 : vector<8xf32> to vector<8x1xf32>
    %33 = tpu.reciprocal %32 {approx = true} : vector<8x1xf32> -> vector<8x1xf32>
    %34 = vector.broadcast %33 : vector<8x1xf32> to vector<8x8xf32>
    %35 = arith.mulf %30, %34 : vector<8x8xf32>
    %36 = vector.shape_cast %35 : vector<8x8xf32> to vector<8x8x1xf32>
    %37 = vector.broadcast %36 : vector<8x8x1xf32> to vector<8x8x128xf32>
    %38 = arith.mulf %37, %13 : vector<8x8x128xf32>
    %cst_16 = arith.constant dense<0.000000e+00> : vector<8x128xf32>
    %39 = vector.multi_reduction <add>, %38, %cst_16 [1] : vector<8x8x128xf32> to vector<8x128xf32>
    %c0_17 = arith.constant 0 : index
    %c0_18 = arith.constant 0 : index
    %40 = vector.load %arg4[%c0_17, %c0_18] : memref<8x80xf32, #tpu.memory_space<vmem>>, vector<8x80xf32>
    %c0_19 = arith.constant 0 : index
    %c0_20 = arith.constant 0 : index
    %41 = vector.load %arg8[%c0_19, %c0_20] : memref<80x128xf32, #tpu.memory_space<vmem>>, vector<80x128xf32>
    %cst_21 = arith.constant dense<0.000000e+00> : vector<8x128xf32>
    %42 = tpu.matmul %40, %41, %cst_21 {dimension_numbers = #tpu.dot_dimension_numbers<[1], [0], [0], [1], [0, 0, 1, 1], [], []>} : vector<8x80xf32>, vector<80x128xf32>, vector<8x128xf32> -> vector<8x128xf32>
    %c0_22 = arith.constant 0 : index
    %c0_23 = arith.constant 0 : index
    %43 = vector.load %arg9[%c0_22, %c0_23] : memref<128x128xf32, #tpu.memory_space<vmem>>, vector<128x128xf32>
    %cst_24 = arith.constant dense<0.000000e+00> : vector<8x128xf32>
    %44 = tpu.matmul %39, %43, %cst_24 {dimension_numbers = #tpu.dot_dimension_numbers<[1], [0], [0], [1], [0, 0, 1, 1], [], []>} : vector<8x128xf32>, vector<128x128xf32>, vector<8x128xf32> -> vector<8x128xf32>
    %45 = arith.addf %42, %44 : vector<8x128xf32>
    %c0_25 = arith.constant 0 : index
    %c0_26 = arith.constant 0 : index
    %46 = vector.load %arg10[%c0_25, %c0_26] : memref<1x128xf32, #tpu.memory_space<vmem>>, vector<1x128xf32>
    %47 = vector.broadcast %46 : vector<1x128xf32> to vector<8x128xf32>
    %48 = arith.addf %45, %47 : vector<8x128xf32>
    %cst_27 = arith.constant 0.000000e+00 : f32
    %49 = vector.broadcast %cst_27 : f32 to vector<8x128xf32>
    %50 = arith.maximumf %48, %49 : vector<8x128xf32>
    %c0_28 = arith.constant 0 : index
    %c0_29 = arith.constant 0 : index
    %51 = vector.load %arg11[%c0_28, %c0_29] : memref<8x128xf32, #tpu.memory_space<vmem>>, vector<8x128xf32>
    %cst_30 = arith.constant dense<0.000000e+00> : vector<8x8xf32>
    %52 = tpu.matmul %51, %50, %cst_30 {dimension_numbers = #tpu.dot_dimension_numbers<[1], [1], [0], [0], [0, 0, 1, 0], [], []>} : vector<8x128xf32>, vector<8x128xf32>, vector<8x8xf32> -> vector<8x8xf32>
    %c0_31 = arith.constant 0 : index
    %c0_32 = arith.constant 0 : index
    %53 = vector.load %arg12[%c0_31, %c0_32] : memref<1x1xf32, #tpu.memory_space<vmem>>, vector<1x1xf32>
    %54 = vector.broadcast %53 : vector<1x1xf32> to vector<8x8xf32>
    %55 = arith.addf %52, %54 : vector<8x8xf32>
    %56 = arith.negf %55 : vector<8x8xf32>
    %57 = math.exp %56 : vector<8x8xf32>
    %cst_33 = arith.constant 1.000000e+00 : f32
    %58 = vector.broadcast %cst_33 : f32 to vector<8x8xf32>
    %59 = arith.addf %58, %57 : vector<8x8xf32>
    %60 = arith.divf %58, %59 : vector<8x8xf32>
    %c0_34 = arith.constant 0 : index
    %c0_35 = arith.constant 0 : index
    %61 = vector.load %arg13[%c0_34, %c0_35] : memref<8x8xf32, #tpu.memory_space<vmem>>, vector<8x8xf32>
    tpu.vector_store %arg13[%c0_34, %c0_35], %60 {strides = array<i32>} : memref<8x8xf32, #tpu.memory_space<vmem>>, vector<8x8xf32>,
    return
  }
  func.func @transform_0(%arg0: i32) -> (i32, i32) {
    %c0_i32 = arith.constant 0 : i32
    %c0_i32_0 = arith.constant 0 : i32
    return %arg0, %c0_i32 : i32, i32
  }
  func.func @transform_1(%arg0: i32) -> (i32, i32) {
    %c0_i32 = arith.constant 0 : i32
    %c0_i32_0 = arith.constant 0 : i32
    %c0_i32_1 = arith.constant 0 : i32
    return %c0_i32, %c0_i32_0 : i32, i32
  }
  func.func @transform_2(%arg0: i32) -> (i32, i32) {
    %c0_i32 = arith.constant 0 : i32
    %c0_i32_0 = arith.constant 0 : i32
    return %arg0, %c0_i32 : i32, i32
  }
  func.func @transform_3(%arg0: i32) -> (i32, i32) {
    %c0_i32 = arith.constant 0 : i32
    %c0_i32_0 = arith.constant 0 : i32
    return %arg0, %c0_i32 : i32, i32
  }
  func.func @transform_4(%arg0: i32) -> (i32, i32) {
    %c0_i32 = arith.constant 0 : i32
    %c0_i32_0 = arith.constant 0 : i32
    %c0_i32_1 = arith.constant 0 : i32
    return %c0_i32, %c0_i32_0 : i32, i32
  }
  func.func @transform_5(%arg0: i32) -> (i32, i32) {
    %c0_i32 = arith.constant 0 : i32
    %c0_i32_0 = arith.constant 0 : i32
    %c0_i32_1 = arith.constant 0 : i32
    return %c0_i32, %c0_i32_0 : i32, i32
  }
  func.func @transform_6(%arg0: i32) -> (i32, i32) {
    %c0_i32 = arith.constant 0 : i32
    %c0_i32_0 = arith.constant 0 : i32
    %c0_i32_1 = arith.constant 0 : i32
    return %c0_i32, %c0_i32_0 : i32, i32
  }
  func.func @transform_7(%arg0: i32) -> (i32, i32) {
    %c0_i32 = arith.constant 0 : i32
    %c0_i32_0 = arith.constant 0 : i32
    %c0_i32_1 = arith.constant 0 : i32
    return %c0_i32, %c0_i32_0 : i32, i32
  }
  func.func @transform_8(%arg0: i32) -> (i32, i32) {
    %c0_i32 = arith.constant 0 : i32
    %c0_i32_0 = arith.constant 0 : i32
    %c0_i32_1 = arith.constant 0 : i32
    return %c0_i32, %c0_i32_0 : i32, i32
  }
  func.func @transform_9(%arg0: i32) -> (i32, i32) {
    %c0_i32 = arith.constant 0 : i32
    %c0_i32_0 = arith.constant 0 : i32
    %c0_i32_1 = arith.constant 0 : i32
    return %c0_i32, %c0_i32_0 : i32, i32
  }
  func.func @transform_10(%arg0: i32) -> (i32, i32) {
    %c0_i32 = arith.constant 0 : i32
    %c0_i32_0 = arith.constant 0 : i32
    %c0_i32_1 = arith.constant 0 : i32
    return %c0_i32, %c0_i32_0 : i32, i32
  }
  func.func @transform_11(%arg0: i32) -> (i32, i32) {
    %c0_i32 = arith.constant 0 : i32
    %c0_i32_0 = arith.constant 0 : i32
    %c0_i32_1 = arith.constant 0 : i32
    return %c0_i32, %c0_i32_0 : i32, i32
  }
  func.func @transform_12(%arg0: i32) -> (i32, i32) {
    %c0_i32 = arith.constant 0 : i32
    %c0_i32_0 = arith.constant 0 : i32
    return %arg0, %c0_i32 : i32, i32
  }
}

</mosaic_0001>

<llo_original>
// kernel: tpu_custom_call.1
$region0: #{tpu_custom_call.1}
  #allocation0 [shape = 'u32[]', space=smem, size = 0x4, offset = 0x4, fixed_abs, tag = 'smem constant byte address 0x4 - core index']
  #allocation1 [shape = 'u32[72,128]{1,0:T(1,128)}', space=vmem, size = 0x9000, scoped, tag = 'internal scratch']
  #allocation2 [shape = 'f32[1,1]{1,0:T(1,128)S(1)}', space=vmem, size = 0x200, scoped, tag = 'scoped memory for tpu_custom_call.1']
  %s0 = inlined_call_operand.vmem [shape: s32[64,1], index: 0, kind: input, shape index: {}]
  %s1 = inlined_call_operand.hbm [shape: f32[100,256], index: 1, kind: input, shape index: {}]
  %s2 = inlined_call_operand.vmem [shape: f32[8,32], index: 2, kind: input, shape index: {}]
  %s3 = inlined_call_operand.vmem [shape: f32[8,80], index: 3, kind: input, shape index: {}]
  %s4 = inlined_call_operand.vmem [shape: f32[32,128], index: 4, kind: input, shape index: {}]
  %s5 = inlined_call_operand.vmem [shape: f32[1,128], index: 5, kind: input, shape index: {}]
  %s6 = inlined_call_operand.vmem [shape: f32[1,256], index: 6, kind: input, shape index: {}]
  %s7 = inlined_call_operand.hbm [shape: f32[80,128], index: 7, kind: input, shape index: {}]
  %s8 = inlined_call_operand.hbm [shape: f32[128,128], index: 8, kind: input, shape index: {}]
  %s9 = inlined_call_operand.vmem [shape: f32[1,128], index: 9, kind: input, shape index: {}]
  %s10 = inlined_call_operand.vmem [shape: f32[8,128], index: 10, kind: input, shape index: {}]
  %s11 = inlined_call_operand.<no memory space> [shape: f32[1,1], index: 11, kind: input, shape index: {}]
  %s12 = inlined_call_operand.hbm [shape: f32[8,8], index: 12, kind: output, shape index: {}]
  %s13 = sld [smem:[#allocation0]]
  $region70: #{tpu_custom_call.1} parent=0
    _
  %s15 = ssub.s32 1, %s13
  %s16 = scalar_select 0, %s15, %s13
  %v17 = vstv %s11
  %18 = vst [vmem:[#allocation2] sm:$0x1] %v17
  $region1: #{tpu_custom_call.1} parent=0
    #allocation3 [shape = 'u8[106496]{0}', space=vmem, size = 0x1a000, scoped, tag = 'input window, operand 1, single buffered']
    #allocation4 [shape = 's32[1]{0}', space=sflag, size = 0x4, scoped, tag = 'scoped memory for tpu_custom_call.1']
    #allocation5 [shape = 's32[1]{0}', space=sflag, size = 0x4, scoped, tag = 'scoped memory for tpu_custom_call.1']
    #allocation6 [shape = 'u8[40960]{0}', space=vmem, size = 0xa000, scoped, tag = 'input window, operand 7, single buffered']
    #allocation7 [shape = 's32[1]{0}', space=sflag, size = 0x4, scoped, tag = 'scoped memory for tpu_custom_call.1']
    #allocation8 [shape = 'u8[65536]{0}', space=vmem, size = 0x10000, scoped, tag = 'input window, operand 8, single buffered']
    #allocation9 [shape = 'u8[4096]{0}', space=vmem, size = 0x1000, scoped, tag = 'output window, operand 0, single buffered']
    %19 = vsyncpa [#allocation4], 0
    %20 = vsyncpa [#allocation7], 0
    %21 = vsyncpa [#allocation5], 0
    // Predicated region
    $region2: #{tpu_custom_call.1} parent=1 // pred_check
      _
    $region3: #{tpu_custom_call.1} parent=1 // pred_check_branch
      %23 = sbr.rel (0) target = $region5
    $region4: #{tpu_custom_call.1} parent=1 // pred_region
      _
    $region5: #{tpu_custom_call.1} parent=1 // pred_fallthru
      _
    // Predicated region
    $region6: #{tpu_custom_call.1} parent=1 // pred_check
      _
    $region7: #{tpu_custom_call.1} parent=1 // pred_check_branch
      %25 = sbr.rel (0) target = $region9
    $region8: #{tpu_custom_call.1} parent=1 // pred_region
      %27 = vsyncadd [#allocation4], 0
      %s28 = sshll.u32 %s1, 4
      %s29 = int_to_ptr.hbm [resolvable:$true] %s28
      %s30 = sshll.u32 [#allocation3], 4
      %s31 = int_to_ptr.vmem [resolvable:$true] %s30
      %36 = dma.hbm_to_vmem [thread:$0]  %s29, 3328, %s31, [#allocation4], 256, 256, 16
    $region9: #{tpu_custom_call.1} parent=1 // pred_fallthru
      _
    // Predicated region
    $region10: #{tpu_custom_call.1} parent=1 // pred_check
      _
    $region11: #{tpu_custom_call.1} parent=1 // pred_check_branch
      %38 = sbr.rel (0) target = $region13
    $region12: #{tpu_custom_call.1} parent=1 // pred_region
      _
    $region13: #{tpu_custom_call.1} parent=1 // pred_fallthru
      _
    // Predicated region
    $region14: #{tpu_custom_call.1} parent=1 // pred_check
      _
    $region15: #{tpu_custom_call.1} parent=1 // pred_check_branch
      %40 = sbr.rel (0) target = $region17
    $region16: #{tpu_custom_call.1} parent=1 // pred_region
      _
    $region17: #{tpu_custom_call.1} parent=1 // pred_fallthru
      _
    // Predicated region
    $region18: #{tpu_custom_call.1} parent=1 // pred_check
      _
    $region19: #{tpu_custom_call.1} parent=1 // pred_check_branch
      %42 = sbr.rel (0) target = $region21
    $region20: #{tpu_custom_call.1} parent=1 // pred_region
      _
    $region21: #{tpu_custom_call.1} parent=1 // pred_fallthru
      _
    // Predicated region
    $region22: #{tpu_custom_call.1} parent=1 // pred_check
      _
    $region23: #{tpu_custom_call.1} parent=1 // pred_check_branch
      %44 = sbr.rel (0) target = $region25
    $region24: #{tpu_custom_call.1} parent=1 // pred_region
      _
    $region25: #{tpu_custom_call.1} parent=1 // pred_fallthru
      _
    // Predicated region
    $region26: #{tpu_custom_call.1} parent=1 // pred_check
      _
    $region27: #{tpu_custom_call.1} parent=1 // pred_check_branch
      %46 = sbr.rel (0) target = $region29
    $region28: #{tpu_custom_call.1} parent=1 // pred_region
      _
    $region29: #{tpu_custom_call.1} parent=1 // pred_fallthru
      _
    // Predicated region
    $region30: #{tpu_custom_call.1} parent=1 // pred_check
      _
    $region31: #{tpu_custom_call.1} parent=1 // pred_check_branch
      %48 = sbr.rel (0) target = $region33
    $region32: #{tpu_custom_call.1} parent=1 // pred_region
      %50 = vsyncadd [#allocation7], 0
      %s51 = sshll.u32 %s7, 4
      %s52 = int_to_ptr.hbm [resolvable:$true] %s51
      %s53 = sshll.u32 [#allocation6], 4
      %s54 = int_to_ptr.vmem [resolvable:$true] %s53
      %59 = dma.hbm_to_vmem [thread:$0]  %s52, 1280, %s54, [#allocation7], 128, 128, 8
    $region33: #{tpu_custom_call.1} parent=1 // pred_fallthru
      _
    // Predicated region
    $region34: #{tpu_custom_call.1} parent=1 // pred_check
      _
    $region35: #{tpu_custom_call.1} parent=1 // pred_check_branch
      %61 = sbr.rel (0) target = $region37
    $region36: #{tpu_custom_call.1} parent=1 // pred_region
      %63 = vsyncadd [#allocation7], 0
      %s64 = sshll.u32 %s8, 4
      %s65 = int_to_ptr.hbm [resolvable:$true] %s64
      %s66 = sshll.u32 [#allocation8], 4
      %s67 = int_to_ptr.vmem [resolvable:$true] %s66
      %72 = dma.hbm_to_vmem [thread:$0]  %s65, 2048, %s67, [#allocation7], 128, 128, 8
    $region37: #{tpu_custom_call.1} parent=1 // pred_fallthru
      _
    // Predicated region
    $region38: #{tpu_custom_call.1} parent=1 // pred_check
      _
    $region39: #{tpu_custom_call.1} parent=1 // pred_check_branch
      %74 = sbr.rel (0) target = $region41
    $region40: #{tpu_custom_call.1} parent=1 // pred_region
      _
    $region41: #{tpu_custom_call.1} parent=1 // pred_fallthru
      _
    // Predicated region
    $region42: #{tpu_custom_call.1} parent=1 // pred_check
      _
    $region43: #{tpu_custom_call.1} parent=1 // pred_check_branch
      %76 = sbr.rel (0) target = $region45
    $region44: #{tpu_custom_call.1} parent=1 // pred_region
      _
    $region45: #{tpu_custom_call.1} parent=1 // pred_fallthru
      _
    // Predicated region
    $region46: #{tpu_custom_call.1} parent=1 // pred_check
      _
    $region47: #{tpu_custom_call.1} parent=1 // pred_check_branch
      %78 = sbr.rel (0) target = $region49
    $region48: #{tpu_custom_call.1} parent=1 // pred_region
      _
    $region49: #{tpu_custom_call.1} parent=1 // pred_fallthru
      _
    // Predicated region
    $region50: #{tpu_custom_call.1} parent=1 // pred_check
      _
    $region51: #{tpu_custom_call.1} parent=1 // pred_check_branch
      %80 = sbr.rel (0) target = $region53
    $region52: #{tpu_custom_call.1} parent=1 // pred_region
      %82 = dma.done [#allocation4], 3328
    $region53: #{tpu_custom_call.1} parent=1 // pred_fallthru
      _
    // Predicated region
    $region54: #{tpu_custom_call.1} parent=1 // pred_check
      _
    $region55: #{tpu_custom_call.1} parent=1 // pred_check_branch
      %84 = sbr.rel (0) target = $region57
    $region56: #{tpu_custom_call.1} parent=1 // pred_region
      %86 = dma.done [#allocation7], 1280
    $region57: #{tpu_custom_call.1} parent=1 // pred_fallthru
      _
    // Predicated region
    $region58: #{tpu_custom_call.1} parent=1 // pred_check
      _
    $region59: #{tpu_custom_call.1} parent=1 // pred_check_branch
      %88 = sbr.rel (0) target = $region61
    $region60: #{tpu_custom_call.1} parent=1 // pred_region
      %90 = dma.done [#allocation7], 2048
    $region61: #{tpu_custom_call.1} parent=1 // pred_fallthru
      _
    %v91 = vld [vmem:[%s0] sm:$0xff]
    %v92 = vld [vmem:[%s0 + $0x8] sm:$0xff]
    %v93 = vld [vmem:[%s0 + $0x10] sm:$0xff]
    %v94 = vld [vmem:[%s0 + $0x18] sm:$0xff]
    %v95 = vld [vmem:[%s0 + $0x20] sm:$0xff]
    %v96 = vld [vmem:[%s0 + $0x28] sm:$0xff]
    %v97 = vld [vmem:[%s0 + $0x30] sm:$0xff]
    %v98 = vld [vmem:[%s0 + $0x38] sm:$0xff]
    %v99 = vlaneseq
    %v100 = vand.u32 %v99, 127
    %101 = vset.pattern.permute.xlu0 0
    %102 = vperm.xlu0 %101, %v91
    %v103 = vpop.permute.xlu0 %102
    %104 = vset.pattern.permute.xlu0 0
    %105 = vperm.xlu0 %104, %v92
    %v106 = vpop.permute.xlu0 %105
    %107 = vset.pattern.permute.xlu0 0
    %108 = vperm.xlu0 %107, %v93
    %v109 = vpop.permute.xlu0 %108
    %110 = vset.pattern.permute.xlu0 0
    %111 = vperm.xlu0 %110, %v94
    %v112 = vpop.permute.xlu0 %111
    %113 = vset.pattern.permute.xlu0 0
    %114 = vperm.xlu0 %113, %v95
    %v115 = vpop.permute.xlu0 %114
    %116 = vset.pattern.permute.xlu0 0
    %117 = vperm.xlu0 %116, %v96
    %v118 = vpop.permute.xlu0 %117
    %119 = vset.pattern.permute.xlu0 0
    %120 = vperm.xlu0 %119, %v97
    %v121 = vpop.permute.xlu0 %120
    %122 = vset.pattern.permute.xlu0 0
    %123 = vperm.xlu0 %122, %v98
    %v124 = vpop.permute.xlu0 %123
    %vm125 = vcmp.eq.s32.totalorder %v103, %v100
    %vm126 = vcmp.eq.s32.totalorder %v106, %v100
    %vm127 = vcmp.eq.s32.totalorder %v109, %v100
    %vm128 = vcmp.eq.s32.totalorder %v112, %v100
    %vm129 = vcmp.eq.s32.totalorder %v115, %v100
    %vm130 = vcmp.eq.s32.totalorder %v118, %v100
    %vm131 = vcmp.eq.s32.totalorder %v121, %v100
    %vm132 = vcmp.eq.s32.totalorder %v124, %v100
    %v133 = vsel %vm125, 1, 0
    %v134 = vsel %vm126, 1, 0
    %v135 = vsel %vm127, 1, 0
    %v136 = vsel %vm128, 1, 0
    %v137 = vsel %vm129, 1, 0
    %v138 = vsel %vm130, 1, 0
    %v139 = vsel %vm131, 1, 0
    %v140 = vsel %vm132, 1, 0
    %v141 = vcvt.s32.f32 %v133
    %v142 = vcvt.s32.f32 %v134
    %v143 = vcvt.s32.f32 %v135
    %v144 = vcvt.s32.f32 %v136
    %v145 = vcvt.s32.f32 %v137
    %v146 = vcvt.s32.f32 %v138
    %v147 = vcvt.s32.f32 %v139
    %v148 = vcvt.s32.f32 %v140
    %v149 = vld [vmem:[#allocation3] sm:$0xff]
    %v150 = vld [vmem:[#allocation3 + $0x8] sm:$0xff]
    %v151 = vld [vmem:[#allocation3 + $0x10] sm:$0xff]
    %v152 = vld [vmem:[#allocation3 + $0x18] sm:$0xff]
    %v153 = vld [vmem:[#allocation3 + $0x20] sm:$0xff]
    %v154 = vld [vmem:[#allocation3 + $0x28] sm:$0xff]
    %v155 = vld [vmem:[#allocation3 + $0x30] sm:$0xff]
    %v156 = vld [vmem:[#allocation3 + $0x38] sm:$0xff]
    %v157 = vld [vmem:[#allocation3 + $0x40] sm:$0xff]
    %v158 = vld [vmem:[#allocation3 + $0x48] sm:$0xff]
    %v159 = vld [vmem:[#allocation3 + $0x50] sm:$0xff]
    %v160 = vld [vmem:[#allocation3 + $0x58] sm:$0xff]
    %v161 = vld [vmem:[#allocation3 + $0x60] sm:$0xff]
    %v162 = vld [vmem:[#allocation3 + $0x68] sm:$0xff]
    %v163 = vld [vmem:[#allocation3 + $0x70] sm:$0xff]
    %v164 = vld [vmem:[#allocation3 + $0x78] sm:$0xff]
    %v165 = vld [vmem:[#allocation3 + $0x80] sm:$0xff]
    %v166 = vld [vmem:[#allocation3 + $0x88] sm:$0xff]
    %v167 = vld [vmem:[#allocation3 + $0x90] sm:$0xff]
    %v168 = vld [vmem:[#allocation3 + $0x98] sm:$0xff]
    %v169 = vld [vmem:[#allocation3 + $0xa0] sm:$0xff]
    %v170 = vld [vmem:[#allocation3 + $0xa8] sm:$0xff]
    %v171 = vld [vmem:[#allocation3 + $0xb0] sm:$0xff]
    %v172 = vld [vmem:[#allocation3 + $0xb8] sm:$0xff]
    %v173 = vld [vmem:[#allocation3 + $0xc0] sm:$0xf]
    %v174 = vld [vmem:[#allocation3 + $0xc8] sm:$0xf]
    %v175 = vld [vmem:[%s6] sm:$0x3]
    %v177 = vperm.slane %v175, 0
    %v178 = vperm.slane %v175, 1
    %vm181 = vcmask 818176
    %v183 = vsel %vm181, %v141, 0
    %v186 = vsel %vm181, %v142, 0
    %v189 = vsel %vm181, %v143, 0
    %v192 = vsel %vm181, %v144, 0
    %v195 = vsel %vm181, %v145, 0
    %v198 = vsel %vm181, %v146, 0
    %v201 = vsel %vm181, %v147, 0
    %v204 = vsel %vm181, %v148, 0
    %vm206 = vcmask 1043456
    %v208 = vsel %vm206, %v173, 0
    %v211 = vsel %vm206, %v174, 0
    %213 = vmatpush.msra.mxu0 0.0
    %214 = vmatpush.msra.mxu0 0.0
    %215 = vmatpush.msra.mxu0 0.0
    %216 = vmatpush.msra.mxu0 %v208
    %217 = vmatpush.msra.mxu0 %v171
    %218 = vmatpush.msra.mxu0 %v169
    %219 = vmatpush.msra.mxu0 %v167
    %220 = vmatpush.msra.mxu0 %v165
    %221 = vmatpush.msra.mxu0 %v163
    %222 = vmatpush.msra.mxu0 %v161
    %223 = vmatpush.msra.mxu0 %v159
    %224 = vmatpush.msra.mxu0 %v157
    %225 = vmatpush.msra.mxu0 %v155
    %226 = vmatpush.msra.mxu0 %v153
    %227 = vmatpush.msra.mxu0 %v151
    %228 = vmatpush.msra.mxu0 %v149
    %229 = vmatmul.f32.gmra.mxu0 %v183
    %v230 = vpop.f32.mrf.mxu0
    %v231 = vadd.f32 %v177, %v230
    %232 = vmatmul.f32.gmra.mxu0 %v186
    %v233 = vpop.f32.mrf.mxu0
    %v234 = vadd.f32 %v177, %v233
    %235 = vmatmul.f32.gmra.mxu0 %v189
    %v236 = vpop.f32.mrf.mxu0
    %v237 = vadd.f32 %v177, %v236
    %238 = vmatmul.f32.gmra.mxu0 %v192
    %v239 = vpop.f32.mrf.mxu0
    %v240 = vadd.f32 %v177, %v239
    %241 = vmatmul.f32.gmra.mxu0 %v195
    %v242 = vpop.f32.mrf.mxu0
    %v243 = vadd.f32 %v177, %v242
    %244 = vmatmul.f32.gmra.mxu0 %v198
    %v245 = vpop.f32.mrf.mxu0
    %v246 = vadd.f32 %v177, %v245
    %247 = vmatmul.f32.gmra.mxu0 %v201
    %v248 = vpop.f32.mrf.mxu0
    %v249 = vadd.f32 %v177, %v248
    %250 = vmatmul.f32.gmra.mxu0 %v204
    %v251 = vpop.f32.mrf.mxu0
    %v252 = vadd.f32 %v177, %v251
    %253 = vdwg.mxu0
    %254 = vmatpush.msra.mxu0 0.0
    %255 = vmatpush.msra.mxu0 0.0
    %256 = vmatpush.msra.mxu0 0.0
    %257 = vmatpush.msra.mxu0 %v211
    %258 = vmatpush.msra.mxu0 %v172
    %259 = vmatpush.msra.mxu0 %v170
    %260 = vmatpush.msra.mxu0 %v168
    %261 = vmatpush.msra.mxu0 %v166
    %262 = vmatpush.msra.mxu0 %v164
    %263 = vmatpush.msra.mxu0 %v162
    %264 = vmatpush.msra.mxu0 %v160
    %265 = vmatpush.msra.mxu0 %v158
    %266 = vmatpush.msra.mxu0 %v156
    %267 = vmatpush.msra.mxu0 %v154
    %268 = vmatpush.msra.mxu0 %v152
    %269 = vmatpush.msra.mxu0 %v150
    %270 = vmatmul.f32.gmra.mxu0 %v183
    %v271 = vpop.f32.mrf.mxu0
    %v272 = vadd.f32 %v178, %v271
    %273 = vmatmul.f32.gmra.mxu0 %v186
    %v274 = vpop.f32.mrf.mxu0
    %v275 = vadd.f32 %v178, %v274
    %276 = vmatmul.f32.gmra.mxu0 %v189
    %v277 = vpop.f32.mrf.mxu0
    %v278 = vadd.f32 %v178, %v277
    %279 = vmatmul.f32.gmra.mxu0 %v192
    %v280 = vpop.f32.mrf.mxu0
    %v281 = vadd.f32 %v178, %v280
    %282 = vmatmul.f32.gmra.mxu0 %v195
    %v283 = vpop.f32.mrf.mxu0
    %v284 = vadd.f32 %v178, %v283
    %285 = vmatmul.f32.gmra.mxu0 %v198
    %v286 = vpop.f32.mrf.mxu0
    %v287 = vadd.f32 %v178, %v286
    %288 = vmatmul.f32.gmra.mxu0 %v201
    %v289 = vpop.f32.mrf.mxu0
    %v290 = vadd.f32 %v178, %v289
    %291 = vmatmul.f32.gmra.mxu0 %v204
    %v292 = vpop.f32.mrf.mxu0
    %v293 = vadd.f32 %v178, %v292
    %294 = vdwg.mxu0
    %v295 = vld [vmem:[%s2] sm:$0xff]
    %v296 = vld [vmem:[%s4] sm:$0xff]
    %v297 = vld [vmem:[%s4 + $0x8] sm:$0xff]
    %v298 = vld [vmem:[%s4 + $0x10] sm:$0xff]
    %v299 = vld [vmem:[%s4 + $0x18] sm:$0xff]
    %v300 = vld [vmem:[%s5] sm:$0x1]
    %v302 = vperm.slane %v300, 0
    %vm304 = vcmask 261120
    %v306 = vsel %vm304, %v295, 0
    %308 = vmatpush.msra.mxu0 0.0
    %309 = vmatpush.msra.mxu0 0.0
    %310 = vmatpush.msra.mxu0 0.0
    %311 = vmatpush.msra.mxu0 0.0
    %312 = vmatpush.msra.mxu0 0.0
    %313 = vmatpush.msra.mxu0 0.0
    %314 = vmatpush.msra.mxu0 0.0
    %315 = vmatpush.msra.mxu0 0.0
    %316 = vmatpush.msra.mxu0 0.0
    %317 = vmatpush.msra.mxu0 0.0
    %318 = vmatpush.msra.mxu0 0.0
    %319 = vmatpush.msra.mxu0 0.0
    %320 = vmatpush.msra.mxu0 %v299
    %321 = vmatpush.msra.mxu0 %v298
    %322 = vmatpush.msra.mxu0 %v297
    %323 = vmatpush.msra.mxu0 %v296
    %324 = vmatmul.f32.gmra.mxu0 %v306
    %v325 = vpop.f32.mrf.mxu0
    %v326 = vadd.f32 %v302, %v325
    %327 = vdwg.mxu0
    %v329 = vrot.slane %v326, 1
    %v330 = vrot.slane %v326, 2
    %v331 = vrot.slane %v326, 3
    %v332 = vrot.slane %v326, 4
    %v333 = vrot.slane %v326, 5
    %v334 = vrot.slane %v326, 6
    %v335 = vrot.slane %v326, 7
    %v336 = vperm.slane %v326, 0
    %v337 = vperm.slane %v329, 0
    %v338 = vperm.slane %v330, 0
    %v339 = vperm.slane %v331, 0
    %v340 = vperm.slane %v332, 0
    %v341 = vperm.slane %v333, 0
    %v342 = vperm.slane %v334, 0
    %v343 = vperm.slane %v335, 0
    %v352 = vmul.f32 %v336, %v231
    %v353 = vmul.f32 %v337, %v234
    %v354 = vmul.f32 %v338, %v237
    %v355 = vmul.f32 %v339, %v240
    %v356 = vmul.f32 %v340, %v243
    %v357 = vmul.f32 %v341, %v246
    %v358 = vmul.f32 %v342, %v249
    %v359 = vmul.f32 %v343, %v252
    %360 = vadd.xlane.f32.xlu0 %v352
    %v361 = vpop.xlane.xlu0 %360
    %362 = vadd.xlane.f32.xlu0 %v353
    %v363 = vpop.xlane.xlu0 %362
    %364 = vadd.xlane.f32.xlu0 %v354
    %v365 = vpop.xlane.xlu0 %364
    %366 = vadd.xlane.f32.xlu0 %v355
    %v367 = vpop.xlane.xlu0 %366
    %368 = vadd.xlane.f32.xlu0 %v356
    %v369 = vpop.xlane.xlu0 %368
    %370 = vadd.xlane.f32.xlu0 %v357
    %v371 = vpop.xlane.xlu0 %370
    %372 = vadd.xlane.f32.xlu0 %v358
    %v373 = vpop.xlane.xlu0 %372
    %374 = vadd.xlane.f32.xlu0 %v359
    %v375 = vpop.xlane.xlu0 %374
    %v376 = vmul.f32 %v361, 0.17677669
    %v377 = vmul.f32 %v363, 0.17677669
    %v378 = vmul.f32 %v365, 0.17677669
    %v379 = vmul.f32 %v367, 0.17677669
    %v380 = vmul.f32 %v369, 0.17677669
    %v381 = vmul.f32 %v371, 0.17677669
    %v382 = vmul.f32 %v373, 0.17677669
    %v383 = vmul.f32 %v375, 0.17677669
    %v392 = vperm.slane %v376, %v100
    %v393 = vperm.slane %v377, %v100
    %v394 = vperm.slane %v378, %v100
    %v395 = vperm.slane %v379, %v100
    %v396 = vperm.slane %v380, %v100
    %v397 = vperm.slane %v381, %v100
    %v398 = vperm.slane %v382, %v100
    %v399 = vperm.slane %v383, %v100
    %vm400 = vcmask 1041409
    %v401 = vsel %vm400, %v393, %v392
    %vm402 = vcmask 1042434
    %v403 = vsel %vm402, %v394, %v401
    %vm404 = vcmask 1043459
    %v405 = vsel %vm404, %v395, %v403
    %vm406 = vcmask 1044484
    %v407 = vsel %vm406, %v396, %v405
    %vm408 = vcmask 1045509
    %v409 = vsel %vm408, %v397, %v407
    %vm410 = vcmask 1046534
    %v411 = vsel %vm410, %v398, %v409
    %vm412 = vcmask 1047559
    %v413 = vsel %vm412, %v399, %v411
    %vm415 = vcmask 64512
    %v416 = vsel %vm415, %v413, -inf
    %417 = vmax.xlane.f32.xlu0 %v416
    %v418 = vpop.xlane.xlu0 %417
    %v420 = vperm.slane %v418, 0
    %v421 = vperm.slane %v418, 1
    %v422 = vperm.slane %v418, 2
    %v423 = vperm.slane %v418, 3
    %v424 = vperm.slane %v418, 4
    %v425 = vperm.slane %v418, 5
    %v426 = vperm.slane %v418, 6
    %v427 = vperm.slane %v418, 7
    %v436 = vsub.f32 %v376, %v420
    %v437 = vsub.f32 %v377, %v421
    %v438 = vsub.f32 %v378, %v422
    %v439 = vsub.f32 %v379, %v423
    %v440 = vsub.f32 %v380, %v424
    %v441 = vsub.f32 %v381, %v425
    %v442 = vsub.f32 %v382, %v426
    %v443 = vsub.f32 %v383, %v427
    %v444 = vmul.f32 %v436, 1.442695
    %v445 = vpow.pop %v444
    %v446 = vmul.f32 %v437, 1.442695
    %v447 = vpow.pop %v446
    %v448 = vmul.f32 %v438, 1.442695
    %v449 = vpow.pop %v448
    %v450 = vmul.f32 %v439, 1.442695
    %v451 = vpow.pop %v450
    %v452 = vmul.f32 %v440, 1.442695
    %v453 = vpow.pop %v452
    %v454 = vmul.f32 %v441, 1.442695
    %v455 = vpow.pop %v454
    %v456 = vmul.f32 %v442, 1.442695
    %v457 = vpow.pop %v456
    %v458 = vmul.f32 %v443, 1.442695
    %v459 = vpow.pop %v458
    %468 = vset.pattern.permute.xlu0 0
    %469 = vperm.xlu0 %468, %v445
    %v470 = vpop.permute.xlu0 %469
    %471 = vset.pattern.permute.xlu0 0
    %472 = vperm.xlu0 %471, %v447
    %v473 = vpop.permute.xlu0 %472
    %474 = vset.pattern.permute.xlu0 0
    %475 = vperm.xlu0 %474, %v449
    %v476 = vpop.permute.xlu0 %475
    %477 = vset.pattern.permute.xlu0 0
    %478 = vperm.xlu0 %477, %v451
    %v479 = vpop.permute.xlu0 %478
    %480 = vset.pattern.permute.xlu0 0
    %481 = vperm.xlu0 %480, %v453
    %v482 = vpop.permute.xlu0 %481
    %483 = vset.pattern.permute.xlu0 0
    %484 = vperm.xlu0 %483, %v455
    %v485 = vpop.permute.xlu0 %484
    %486 = vset.pattern.permute.xlu0 0
    %487 = vperm.xlu0 %486, %v457
    %v488 = vpop.permute.xlu0 %487
    %489 = vset.pattern.permute.xlu0 0
    %490 = vperm.xlu0 %489, %v459
    %v491 = vpop.permute.xlu0 %490
    %v492 = vperm.slane %v470, %v100
    %v493 = vperm.slane %v473, %v100
    %v494 = vperm.slane %v476, %v100
    %v495 = vperm.slane %v479, %v100
    %v496 = vperm.slane %v482, %v100
    %v497 = vperm.slane %v485, %v100
    %v498 = vperm.slane %v488, %v100
    %v499 = vperm.slane %v491, %v100
    %v500 = vsel %vm400, %v493, %v492
    %v501 = vsel %vm402, %v494, %v500
    %v502 = vsel %vm404, %v495, %v501
    %v503 = vsel %vm406, %v496, %v502
    %v504 = vsel %vm408, %v497, %v503
    %v505 = vsel %vm410, %v498, %v504
    %v506 = vsel %vm412, %v499, %v505
    %v508 = vsel %vm415, %v506, 0.0
    %509 = vadd.xlane.f32.xlu0 %v508
    %v510 = vpop.xlane.xlu0 %509
    %v511 = vrcp.pop %v510
    %v513 = vperm.slane %v511, 0
    %v514 = vperm.slane %v511, 1
    %v515 = vperm.slane %v511, 2
    %v516 = vperm.slane %v511, 3
    %v517 = vperm.slane %v511, 4
    %v518 = vperm.slane %v511, 5
    %v519 = vperm.slane %v511, 6
    %v520 = vperm.slane %v511, 7
    %v529 = vmul.f32 %v445, %v513
    %v530 = vmul.f32 %v447, %v514
    %v531 = vmul.f32 %v449, %v515
    %v532 = vmul.f32 %v451, %v516
    %v533 = vmul.f32 %v453, %v517
    %v534 = vmul.f32 %v455, %v518
    %v535 = vmul.f32 %v457, %v519
    %v536 = vmul.f32 %v459, %v520
    %538 = vset.pattern.permute.xlu0 0
    %539 = vperm.xlu0 %538, %v529
    %v540 = vpop.permute.xlu0 %539
    %543 = vset.pattern.permute.xlu0 0
    %544 = vperm.xlu0 %543, %v530
    %v545 = vpop.permute.xlu0 %544
    %548 = vset.pattern.permute.xlu0 0
    %549 = vperm.xlu0 %548, %v531
    %v550 = vpop.permute.xlu0 %549
    %553 = vset.pattern.permute.xlu0 0
    %554 = vperm.xlu0 %553, %v532
    %v555 = vpop.permute.xlu0 %554
    %558 = vset.pattern.permute.xlu0 0
    %559 = vperm.xlu0 %558, %v533
    %v560 = vpop.permute.xlu0 %559
    %563 = vset.pattern.permute.xlu0 0
    %564 = vperm.xlu0 %563, %v534
    %v565 = vpop.permute.xlu0 %564
    %568 = vset.pattern.permute.xlu0 0
    %569 = vperm.xlu0 %568, %v535
    %v570 = vpop.permute.xlu0 %569
    %573 = vset.pattern.permute.xlu0 0
    %574 = vperm.xlu0 %573, %v536
    %v575 = vpop.permute.xlu0 %574
    %v577 = vmul.f32 %v540, %v272
    %v578 = vmul.f32 %v545, %v275
    %v579 = vmul.f32 %v550, %v278
    %v580 = vmul.f32 %v555, %v281
    %v581 = vmul.f32 %v560, %v284
    %v582 = vmul.f32 %v565, %v287
    %v583 = vmul.f32 %v570, %v290
    %v584 = vmul.f32 %v575, %v293
    %v585 = vrot.slane %v577, 4
    %v586 = vadd.f32 %v577, %v585
    %v587 = vrot.slane %v586, 2
    %v588 = vadd.f32 %v586, %v587
    %v589 = vrot.slane %v588, 1
    %v590 = vadd.f32 %v588, %v589
    %v591 = vrot.slane %v578, 4
    %v592 = vadd.f32 %v578, %v591
    %v593 = vrot.slane %v592, 2
    %v594 = vadd.f32 %v592, %v593
    %v595 = vrot.slane %v594, 1
    %v596 = vadd.f32 %v594, %v595
    %v597 = vrot.slane %v579, 4
    %v598 = vadd.f32 %v579, %v597
    %v599 = vrot.slane %v598, 2
    %v600 = vadd.f32 %v598, %v599
    %v601 = vrot.slane %v600, 1
    %v602 = vadd.f32 %v600, %v601
    %v603 = vrot.slane %v580, 4
    %v604 = vadd.f32 %v580, %v603
    %v605 = vrot.slane %v604, 2
    %v606 = vadd.f32 %v604, %v605
    %v607 = vrot.slane %v606, 1
    %v608 = vadd.f32 %v606, %v607
    %v609 = vrot.slane %v581, 4
    %v610 = vadd.f32 %v581, %v609
    %v611 = vrot.slane %v610, 2
    %v612 = vadd.f32 %v610, %v611
    %v613 = vrot.slane %v612, 1
    %v614 = vadd.f32 %v612, %v613
    %v615 = vrot.slane %v582, 4
    %v616 = vadd.f32 %v582, %v615
    %v617 = vrot.slane %v616, 2
    %v618 = vadd.f32 %v616, %v617
    %v619 = vrot.slane %v618, 1
    %v620 = vadd.f32 %v618, %v619
    %v621 = vrot.slane %v583, 4
    %v622 = vadd.f32 %v583, %v621
    %v623 = vrot.slane %v622, 2
    %v624 = vadd.f32 %v622, %v623
    %v625 = vrot.slane %v624, 1
    %v626 = vadd.f32 %v624, %v625
    %v627 = vrot.slane %v584, 4
    %v628 = vadd.f32 %v584, %v627
    %v629 = vrot.slane %v628, 2
    %v630 = vadd.f32 %v628, %v629
    %v631 = vrot.slane %v630, 1
    %v632 = vadd.f32 %v630, %v631
    %v633 = vld [vmem:[%s3] sm:$0xff]
    %v634 = vld [vmem:[#allocation6] sm:$0xff]
    %v635 = vld [vmem:[#allocation6 + $0x8] sm:$0xff]
    %v636 = vld [vmem:[#allocation6 + $0x10] sm:$0xff]
    %v637 = vld [vmem:[#allocation6 + $0x18] sm:$0xff]
    %v638 = vld [vmem:[#allocation6 + $0x20] sm:$0xff]
    %v639 = vld [vmem:[#allocation6 + $0x28] sm:$0xff]
    %v640 = vld [vmem:[#allocation6 + $0x30] sm:$0xff]
    %v641 = vld [vmem:[#allocation6 + $0x38] sm:$0xff]
    %v642 = vld [vmem:[#allocation6 + $0x40] sm:$0xff]
    %v643 = vld [vmem:[#allocation6 + $0x48] sm:$0xff]
    %v644 = vld [vmem:[#allocation8] sm:$0xff]
    %v645 = vld [vmem:[#allocation8 + $0x8] sm:$0xff]
    %v646 = vld [vmem:[#allocation8 + $0x10] sm:$0xff]
    %v647 = vld [vmem:[#allocation8 + $0x18] sm:$0xff]
    %v648 = vld [vmem:[#allocation8 + $0x20] sm:$0xff]
    %v649 = vld [vmem:[#allocation8 + $0x28] sm:$0xff]
    %v650 = vld [vmem:[#allocation8 + $0x30] sm:$0xff]
    %v651 = vld [vmem:[#allocation8 + $0x38] sm:$0xff]
    %v652 = vld [vmem:[#allocation8 + $0x40] sm:$0xff]
    %v653 = vld [vmem:[#allocation8 + $0x48] sm:$0xff]
    %v654 = vld [vmem:[#allocation8 + $0x50] sm:$0xff]
    %v655 = vld [vmem:[#allocation8 + $0x58] sm:$0xff]
    %v656 = vld [vmem:[#allocation8 + $0x60] sm:$0xff]
    %v657 = vld [vmem:[#allocation8 + $0x68] sm:$0xff]
    %v658 = vld [vmem:[#allocation8 + $0x70] sm:$0xff]
    %v659 = vld [vmem:[#allocation8 + $0x78] sm:$0xff]
    %v668 = vsel %vm400, %v596, %v590
    %v669 = vsel %vm402, %v602, %v668
    %v670 = vsel %vm404, %v608, %v669
    %v671 = vsel %vm406, %v614, %v670
    %v672 = vsel %vm408, %v620, %v671
    %v673 = vsel %vm410, %v626, %v672
    %v674 = vsel %vm412, %v632, %v673
    %676 = vmatpush.msra.mxu0 %v659
    %677 = vmatpush.msra.mxu0 %v658
    %678 = vmatpush.msra.mxu0 %v657
    %679 = vmatpush.msra.mxu0 %v656
    %680 = vmatpush.msra.mxu0 %v655
    %681 = vmatpush.msra.mxu0 %v654
    %682 = vmatpush.msra.mxu0 %v653
    %683 = vmatpush.msra.mxu0 %v652
    %684 = vmatpush.msra.mxu0 %v651
    %685 = vmatpush.msra.mxu0 %v650
    %686 = vmatpush.msra.mxu0 %v649
    %687 = vmatpush.msra.mxu0 %v648
    %688 = vmatpush.msra.mxu0 %v647
    %689 = vmatpush.msra.mxu0 %v646
    %690 = vmatpush.msra.mxu0 %v645
    %691 = vmatpush.msra.mxu0 %v644
    %692 = vmatmul.f32.gmra.mxu0 %v674
    %v693 = vpop.f32.mrf.mxu0
    %v694 = vadd.f32 0.0, %v693
    %695 = vdwg.mxu0
    %vm696 = vcmask 654336
    %v698 = vsel %vm696, %v633, 0
    %700 = vmatpush.msra.mxu0 0.0
    %701 = vmatpush.msra.mxu0 0.0
    %702 = vmatpush.msra.mxu0 0.0
    %703 = vmatpush.msra.mxu0 0.0
    %704 = vmatpush.msra.mxu0 0.0
    %705 = vmatpush.msra.mxu0 0.0
    %706 = vmatpush.msra.mxu0 %v643
    %707 = vmatpush.msra.mxu0 %v642
    %708 = vmatpush.msra.mxu0 %v641
    %709 = vmatpush.msra.mxu0 %v640
    %710 = vmatpush.msra.mxu0 %v639
    %711 = vmatpush.msra.mxu0 %v638
    %712 = vmatpush.msra.mxu0 %v637
    %713 = vmatpush.msra.mxu0 %v636
    %714 = vmatpush.msra.mxu0 %v635
    %715 = vmatpush.msra.mxu0 %v634
    %716 = vmatmul.f32.gmra.mxu0 %v698
    %v717 = vpop.f32.mrf.mxu0
    %v718 = vadd.f32 %v694, %v717
    %719 = vdwg.mxu0
    %v720 = vld [vmem:[%s9] sm:$0x1]
    %v722 = vperm.slane %v720, 0
    %v724 = vadd.f32 %v718, %v722
    %v725 = vmax.f32 %v724, 0.0
    %v726 = vld [vmem:[%s10] sm:$0xff]
    %v727 = vld [vmem:[#allocation2] sm:$0x1]
    %v729 = vperm.slane %v727, 0
    %730 = vset.pattern.permute.xlu0 0
    %731 = vperm.xlu0 %730, %v729
    %v732 = vpop.permute.xlu0 %731
    %734 = vmatpush.xpose.msra.mxu0 0.0
    %735 = vmatpush.xpose.msra.mxu0 0.0
    %736 = vmatpush.xpose.msra.mxu0 0.0
    %737 = vmatpush.xpose.msra.mxu0 0.0
    %738 = vmatpush.xpose.msra.mxu0 0.0
    %739 = vmatpush.xpose.msra.mxu0 0.0
    %740 = vmatpush.xpose.msra.mxu0 0.0
    %741 = vmatpush.xpose.msra.mxu0 0.0
    %742 = vmatpush.xpose.msra.mxu0 0.0
    %743 = vmatpush.xpose.msra.mxu0 0.0
    %744 = vmatpush.xpose.msra.mxu0 0.0
    %745 = vmatpush.xpose.msra.mxu0 0.0
    %746 = vmatpush.xpose.msra.mxu0 0.0
    %747 = vmatpush.xpose.msra.mxu0 0.0
    %748 = vmatpush.xpose.msra.mxu0 0.0
    %749 = vmatpush.xpose.msra.mxu0 %v725
    %750 = vmatmul.f32.gmra.mxu0 %v726
    %v751 = vpop.f32.mrf.mxu0
    %v752 = vadd.f32 %v732, %v751
    %753 = vdwg.mxu0
    %v754 = vxor.u32 %v752, 2147483648
    %v755 = vmul.f32 %v754, 1.442695
    %v756 = vpow.pop %v755
    %v757 = vadd.f32 %v756, 1.0
    %v758 = vrcp.pop %v757
    %v759 = vmul.f32 %v757, %v758
    %v760 = vsub.f32 1.0, %v759
    %v761 = vmul.f32 %v758, %v760
    %v762 = vadd.f32 %v758, %v761
    %vm763 = vweird.f32 %v757
    %vm764 = vweird.f32 %v758
    %vm765 = vmor %vm763, %vm764
    %v766 = vsel %vm765, %v758, %v762
    %v767 = vand.u32 2147483647, %v757
    %vm768 = vcmp.eq.f32.partialorder %v767, 8.507059e+37
    %v769 = vand.u32 %v757, 2147483648
    %v770 = vor.u32 1.1754944e-38, %v769
    %v771 = vsel %vm768, %v770, %v766
    %v772 = vmul.f32 1.0, %v771
    %773 = vst.msk [vmem:[#allocation9] sm:$0xff] %vm415, %v772
    // Predicated region
    $region62: #{tpu_custom_call.1} parent=1 // pred_check
      _
    $region63: #{tpu_custom_call.1} parent=1 // pred_check_branch
      %775 = sbr.rel (0) target = $region65
    $region64: #{tpu_custom_call.1} parent=1 // pred_region
      %777 = vsyncadd [#allocation5], 0
      %s779 = sshll.u32 [#allocation9], 4
      %s780 = int_to_ptr.vmem [resolvable:$true] %s779
      %s781 = sshll.u32 %s12, 4
      %s782 = int_to_ptr.hbm [resolvable:$true] %s781
      %784 = dma.vmem_to_hbm [thread:$0]  %s780, 128, %s782, [#allocation5]
    $region65: #{tpu_custom_call.1} parent=1 // pred_fallthru
      _
    // Predicated region
    $region66: #{tpu_custom_call.1} parent=1 // pred_check
      _
    $region67: #{tpu_custom_call.1} parent=1 // pred_check_branch
      %786 = sbr.rel (0) target = $region69
    $region68: #{tpu_custom_call.1} parent=1 // pred_region
      %788 = dma.done [#allocation5], 128
    $region69: #{tpu_custom_call.1} parent=1 // pred_fallthru
      _
    %789 = vsyncpa [#allocation4], 1
    %790 = vsyncpa [#allocation7], 1
    %791 = vsyncpa [#allocation5], 1

</llo_original>
